<compile_context>
chip_gen: v5e
topology: v5e:2x2
jax: 0.10.0
libtpu: 0.0.40
codegen_flags: <defaults>
</compile_context>

<pallas_src>
import jax
import jax.numpy as jnp
from jax.experimental import pallas as pl
from jax.experimental.pallas import tpu as pltpu

LANE = 128      # vreg lane width
SUBLANE = 8     # vreg sublane count


def _round_up(n, m):
    return ((n + m - 1) // m) * m


def _mlp_kernel(x_ref, w1_ref, b1_ref, w2_ref, b2_ref, w3_ref, b3_ref, o_ref):
    """Fused forward pass (3 matmuls + bias + ReLU) on one batch tile."""
    wdt = w1_ref.dtype
    x = x_ref[...].astype(wdt)                                            # (TB, in)

    h1 = jnp.dot(x, w1_ref[...], preferred_element_type=jnp.float32) + b1_ref[...]
    h1 = jnp.maximum(h1, 0.0)                                             # (TB, 128)

    h2 = jnp.dot(h1.astype(wdt), w2_ref[...],
                 preferred_element_type=jnp.float32) + b2_ref[...]
    h2 = jnp.maximum(h2, 0.0)                                             # (TB, 128)

    logits = jnp.dot(h2.astype(wdt), w3_ref[...],
                     preferred_element_type=jnp.float32) + b3_ref[...]
    o_ref[...] = logits.astype(o_ref.dtype)                               # (TB, num_out)


def prepare_params(params, *, compute_dtype=jnp.float32):
    """One-time parameter prep (at init, NOT per forward call).

    Converts PyTorch-layout (out_features, in_features) weights to (in, out),
    lifts biases to (1, out), and zero-pads only the HIDDEN feature dims up to
    128 lanes.  w1 keeps K=num_inputs (Mosaic pads K in the MXU for free) and
    w3 keeps N=num_outputs (kernel emits the real output width directly).
    """
    w1_t, b1_t = params["w1"], params["b1"]    # (30, num_inputs), (30,)
    w2_t, b2_t = params["w2"], params["b2"]    # (20, 30), (20,)
    w3_t, b3_t = params["w3"], params["b3"]    # (num_outputs, 20), (num_outputs,)

    num_inputs = w1_t.shape[1]
    h1, h2 = w1_t.shape[0], w2_t.shape[0]
    num_outputs = w3_t.shape[0]
    h1_p, h2_p = _round_up(h1, LANE), _round_up(h2, LANE)

    # Layer 1: (num_inputs, h1_p), pad only output dim.
    w1 = jnp.zeros((num_inputs, h1_p), jnp.float32).at[:, :h1].set(w1_t.T)
    b1 = jnp.zeros((1, h1_p), jnp.float32).at[0, :h1].set(b1_t)
    # Layer 2: (h1_p, h2_p), K padded to match lane-dense h1.
    w2 = jnp.zeros((h1_p, h2_p), jnp.float32).at[:h2_t_in(w2_t), :h2].set(w2_t.T) \
        if False else jnp.zeros((h1_p, h2_p), jnp.float32).at[:h1, :h2].set(w2_t.T)
    b2 = jnp.zeros((1, h2_p), jnp.float32).at[0, :h2].set(b2_t)
    # Layer 3: (h2_p, num_outputs), K padded, N left at real width.
    w3 = jnp.zeros((h2_p, num_outputs), jnp.float32).at[:h2, :].set(w3_t.T)
    b3 = jnp.asarray(b3_t, jnp.float32).reshape(1, num_outputs)

    return {
        "w1": w1.astype(compute_dtype), "b1": b1,
        "w2": w2.astype(compute_dtype), "b2": b2,
        "w3": w3.astype(compute_dtype), "b3": b3,
        "num_inputs": int(num_inputs),
        "num_outputs": int(num_outputs),
    }


def h2_t_in(w):  # helper never used at runtime (kept trivially correct)
    return w.shape[1]


def neural_network_forward(x, prepared, *, block_batch=1024):
    """Forward pass matching torch `NeuralNetwork(num_inputs, num_outputs)`.

    x: (batch, num_inputs) float32
    prepared: output of `prepare_params` (pre-transposed, hidden-dim-padded,
              device-resident weights).  Single pallas_call; no pad / slice ops.
    """
    batch, num_inputs = x.shape
    assert num_inputs == prepared["num_inputs"]
    num_outputs = prepared["num_outputs"]

    w1, b1 = prepared["w1"], prepared["b1"]
    w2, b2 = prepared["w2"], prepared["b2"]
    w3, b3 = prepared["w3"], prepared["b3"]

    # Batch tile: whole batch if it fits in one tile (block == full dim is
    # always a legal block shape), otherwise a SUBLANE-aligned block_batch.
    # For very large batches grid >= 2, so v7x's second TensorCore gets work.
    if batch <= block_batch:
        tb = batch
    else:
        tb = _round_up(block_batch, SUBLANE)
    grid = pl.cdiv(batch, tb)

    x = x.astype(w1.dtype)   # no-op for f32; halves x HBM traffic for bf16 params

    resident = lambda i: (0, 0)   # weights/biases stay VMEM-resident across steps

    out = pl.pallas_call(
        _mlp_kernel,
        out_shape=jax.ShapeDtypeStruct((batch, num_outputs), jnp.float32),
        grid=(grid,),
        in_specs=[
            pl.BlockSpec((tb, num_inputs), lambda i: (i, 0)),   # x row tile
            pl.BlockSpec(w1.shape, resident),                   # w1 (num_inputs, 128)
            pl.BlockSpec(b1.shape, resident),                   # b1 (1, 128)
            pl.BlockSpec(w2.shape, resident),                   # w2 (128, 128)
            pl.BlockSpec(b2.shape, resident),                   # b2 (1, 128)
            pl.BlockSpec(w3.shape, resident),                   # w3 (128, num_outputs)
            pl.BlockSpec(b3.shape, resident),                   # b3 (1, num_outputs)
        ],
        out_specs=pl.BlockSpec((tb, num_outputs), lambda i: (i, 0)),
        compiler_params=pltpu.CompilerParams(
            dimension_semantics=("parallel",)),                 # shard batch across TCs
    )(x, w1, b1, w2, b2, w3, b3)

    return out


def init_params(key, num_inputs, num_outputs):
    """Deterministic synthetic parameters with PyTorch nn.Linear shapes (out, in)."""
    ks = jax.random.split(key, 6)

    def _layer(kw, kb, fan_in, fan_out):
        bound = 1.0 / jnp.sqrt(fan_in)
        w = jax.random.uniform(kw, (fan_out, fan_in), jnp.float32, -bound, bound)
        b = jax.random.uniform(kb, (fan_out,), jnp.float32, -bound, bound)
        return w, b

    w1, b1 = _layer(ks[0], ks[1], num_inputs, 30)
    w2, b2 = _layer(ks[2], ks[3], 30, 20)
    w3, b3 = _layer(ks[4], ks[5], 20, num_outputs)
    return {"w1": w1, "b1": b1, "w2": w2, "b2": b2, "w3": w3, "b3": b3}


def _reference_forward(x, params):
    h1 = jnp.maximum(x @ params["w1"].T + params["b1"], 0.0)
    h2 = jnp.maximum(h1 @ params["w2"].T + params["b2"], 0.0)
    return h2 @ params["w3"].T + params["b3"]


if __name__ == "__main__":
    key = jax.random.PRNGKey(0)
    k_x, k_p = jax.random.split(key)

    batch, num_inputs, num_outputs = 2, 50, 3   # NeuralNetwork(50, 3), batch of 2

    x = jax.random.normal(k_x, (batch, num_inputs), dtype=jnp.float32)
    params = init_params(k_p, num_inputs, num_outputs)

    # One-time layout prep (transpose + hidden-dim padding) — outside the per-call path.
    prepared = prepare_params(params)           # compute_dtype=jnp.bfloat16 for v6e/v7x BW

    out = neural_network_forward(x, prepared)
    out = jax.block_until_ready(out)

    ref = _reference_forward(x, params)
    assert out.shape == (batch, num_outputs)
    assert jnp.allclose(out, ref, atol=1e-5, rtol=1e-5)

    print("KERNEL_OK")
</pallas_src>

<mosaic_0001>
module attributes {stable_mosaic.version = 11 : i64} {
  func.func @_mlp_kernel(%arg0: i32, %arg1: memref<2x50xf32, #tpu.memory_space<vmem>>, %arg2: memref<50x128xf32, #tpu.memory_space<vmem>>, %arg3: memref<1x128xf32, #tpu.memory_space<vmem>>, %arg4: memref<128x128xf32, #tpu.memory_space<vmem>>, %arg5: memref<1x128xf32, #tpu.memory_space<vmem>>, %arg6: memref<128x3xf32, #tpu.memory_space<vmem>>, %arg7: memref<1x3xf32, #tpu.memory_space<vmem>>, %arg8: memref<2x3xf32, #tpu.memory_space<vmem>>) attributes {dimension_semantics = [#tpu.dimension_semantics<parallel>], iteration_bounds = array<i64: 1>, scalar_prefetch = 0 : i64, scratch_operands = 0 : i64, tpu.core_type = #tpu.core_type<tc>, window_params = [{transform_indices = @transform_0, window_bounds = array<i64: 2, 50>}, {pipeline_mode = #tpu.pipeline_mode<synchronous>, transform_indices = @transform_1, window_bounds = array<i64: 50, 128>}, {pipeline_mode = #tpu.pipeline_mode<synchronous>, transform_indices = @transform_2, window_bounds = array<i64: 1, 128>}, {pipeline_mode = #tpu.pipeline_mode<synchronous>, transform_indices = @transform_3, window_bounds = array<i64: 128, 128>}, {pipeline_mode = #tpu.pipeline_mode<synchronous>, transform_indices = @transform_4, window_bounds = array<i64: 1, 128>}, {pipeline_mode = #tpu.pipeline_mode<synchronous>, transform_indices = @transform_5, window_bounds = array<i64: 128, 3>}, {pipeline_mode = #tpu.pipeline_mode<synchronous>, transform_indices = @transform_6, window_bounds = array<i64: 1, 3>}, {transform_indices = @transform_7, window_bounds = array<i64: 2, 3>}]} {
    %c0 = arith.constant 0 : index
    %c0_0 = arith.constant 0 : index
    %0 = vector.load %arg1[%c0, %c0_0] : memref<2x50xf32, #tpu.memory_space<vmem>>, vector<2x50xf32>
    %c0_1 = arith.constant 0 : index
    %c0_2 = arith.constant 0 : index
    %1 = vector.load %arg2[%c0_1, %c0_2] : memref<50x128xf32, #tpu.memory_space<vmem>>, vector<50x128xf32>
    %cst = arith.constant dense<0.000000e+00> : vector<2x128xf32>
    %2 = tpu.matmul %0, %1, %cst {dimension_numbers = #tpu.dot_dimension_numbers<[1], [0], [0], [1], [0, 0, 1, 1], [], []>} : vector<2x50xf32>, vector<50x128xf32>, vector<2x128xf32> -> vector<2x128xf32>
    %c0_3 = arith.constant 0 : index
    %c0_4 = arith.constant 0 : index
    %3 = vector.load %arg3[%c0_3, %c0_4] : memref<1x128xf32, #tpu.memory_space<vmem>>, vector<1x128xf32>
    %4 = vector.broadcast %3 : vector<1x128xf32> to vector<2x128xf32>
    %5 = arith.addf %2, %4 : vector<2x128xf32>
    %cst_5 = arith.constant 0.000000e+00 : f32
    %6 = vector.broadcast %cst_5 : f32 to vector<2x128xf32>
    %7 = arith.maximumf %5, %6 : vector<2x128xf32>
    %c0_6 = arith.constant 0 : index
    %c0_7 = arith.constant 0 : index
    %8 = vector.load %arg4[%c0_6, %c0_7] : memref<128x128xf32, #tpu.memory_space<vmem>>, vector<128x128xf32>
    %cst_8 = arith.constant dense<0.000000e+00> : vector<2x128xf32>
    %9 = tpu.matmul %7, %8, %cst_8 {dimension_numbers = #tpu.dot_dimension_numbers<[1], [0], [0], [1], [0, 0, 1, 1], [], []>} : vector<2x128xf32>, vector<128x128xf32>, vector<2x128xf32> -> vector<2x128xf32>
    %c0_9 = arith.constant 0 : index
    %c0_10 = arith.constant 0 : index
    %10 = vector.load %arg5[%c0_9, %c0_10] : memref<1x128xf32, #tpu.memory_space<vmem>>, vector<1x128xf32>
    %11 = vector.broadcast %10 : vector<1x128xf32> to vector<2x128xf32>
    %12 = arith.addf %9, %11 : vector<2x128xf32>
    %cst_11 = arith.constant 0.000000e+00 : f32
    %13 = vector.broadcast %cst_11 : f32 to vector<2x128xf32>
    %14 = arith.maximumf %12, %13 : vector<2x128xf32>
    %c0_12 = arith.constant 0 : index
    %c0_13 = arith.constant 0 : index
    %15 = vector.load %arg6[%c0_12, %c0_13] : memref<128x3xf32, #tpu.memory_space<vmem>>, vector<128x3xf32>
    %cst_14 = arith.constant dense<0.000000e+00> : vector<2x3xf32>
    %16 = tpu.matmul %14, %15, %cst_14 {dimension_numbers = #tpu.dot_dimension_numbers<[1], [0], [0], [1], [0, 0, 1, 1], [], []>} : vector<2x128xf32>, vector<128x3xf32>, vector<2x3xf32> -> vector<2x3xf32>
    %c0_15 = arith.constant 0 : index
    %c0_16 = arith.constant 0 : index
    %17 = vector.load %arg7[%c0_15, %c0_16] : memref<1x3xf32, #tpu.memory_space<vmem>>, vector<1x3xf32>
    %18 = vector.broadcast %17 : vector<1x3xf32> to vector<2x3xf32>
    %19 = arith.addf %16, %18 : vector<2x3xf32>
    %c0_17 = arith.constant 0 : index
    %c0_18 = arith.constant 0 : index
    %20 = vector.load %arg8[%c0_17, %c0_18] : memref<2x3xf32, #tpu.memory_space<vmem>>, vector<2x3xf32>
    tpu.vector_store %arg8[%c0_17, %c0_18], %19 {strides = array<i32>} : memref<2x3xf32, #tpu.memory_space<vmem>>, vector<2x3xf32>,
    return
  }
  func.func @transform_0(%arg0: i32) -> (i32, i32) {
    %c0_i32 = arith.constant 0 : i32
    %c0_i32_0 = arith.constant 0 : i32
    return %arg0, %c0_i32 : i32, i32
  }
  func.func @transform_1(%arg0: i32) -> (i32, i32) {
    %c0_i32 = arith.constant 0 : i32
    %c0_i32_0 = arith.constant 0 : i32
    %c0_i32_1 = arith.constant 0 : i32
    return %c0_i32, %c0_i32_0 : i32, i32
  }
  func.func @transform_2(%arg0: i32) -> (i32, i32) {
    %c0_i32 = arith.constant 0 : i32
    %c0_i32_0 = arith.constant 0 : i32
    %c0_i32_1 = arith.constant 0 : i32
    return %c0_i32, %c0_i32_0 : i32, i32
  }
  func.func @transform_3(%arg0: i32) -> (i32, i32) {
    %c0_i32 = arith.constant 0 : i32
    %c0_i32_0 = arith.constant 0 : i32
    %c0_i32_1 = arith.constant 0 : i32
    return %c0_i32, %c0_i32_0 : i32, i32
  }
  func.func @transform_4(%arg0: i32) -> (i32, i32) {
    %c0_i32 = arith.constant 0 : i32
    %c0_i32_0 = arith.constant 0 : i32
    %c0_i32_1 = arith.constant 0 : i32
    return %c0_i32, %c0_i32_0 : i32, i32
  }
  func.func @transform_5(%arg0: i32) -> (i32, i32) {
    %c0_i32 = arith.constant 0 : i32
    %c0_i32_0 = arith.constant 0 : i32
    %c0_i32_1 = arith.constant 0 : i32
    return %c0_i32, %c0_i32_0 : i32, i32
  }
  func.func @transform_6(%arg0: i32) -> (i32, i32) {
    %c0_i32 = arith.constant 0 : i32
    %c0_i32_0 = arith.constant 0 : i32
    %c0_i32_1 = arith.constant 0 : i32
    return %c0_i32, %c0_i32_0 : i32, i32
  }
  func.func @transform_7(%arg0: i32) -> (i32, i32) {
    %c0_i32 = arith.constant 0 : i32
    %c0_i32_0 = arith.constant 0 : i32
    return %arg0, %c0_i32 : i32, i32
  }
}

</mosaic_0001>

<llo_original>
// kernel: tpu_custom_call.1
$region0: #{tpu_custom_call.1}
  #allocation0 [shape = 'u32[]', space=smem, size = 0x4, offset = 0x4, fixed_abs, tag = 'smem constant byte address 0x4 - core index']
  #allocation1 [shape = 'u32[72,128]{1,0:T(1,128)}', space=vmem, size = 0x9000, scoped, tag = 'internal scratch']
  %s0 = inlined_call_operand.vmem [shape: f32[2,50], index: 0, kind: input, shape index: {}]
  %s1 = inlined_call_operand.hbm [shape: f32[50,128], index: 1, kind: input, shape index: {}]
  %s2 = inlined_call_operand.vmem [shape: f32[1,128], index: 2, kind: input, shape index: {}]
  %s3 = inlined_call_operand.vmem [shape: f32[128,128], index: 3, kind: input, shape index: {}]
  %s4 = inlined_call_operand.vmem [shape: f32[1,128], index: 4, kind: input, shape index: {}]
  %s5 = inlined_call_operand.vmem [shape: f32[128,3], index: 5, kind: input, shape index: {}]
  %s6 = inlined_call_operand.vmem [shape: f32[1,3], index: 6, kind: input, shape index: {}]
  %s7 = inlined_call_operand.hbm [shape: f32[2,3], index: 7, kind: output, shape index: {}]
  %s8 = sld [smem:[#allocation0]]
  $region42: #{tpu_custom_call.1} parent=0
    _
  %s10 = ssub.s32 1, %s8
  %s11 = scalar_select 0, %s10, %s8
  $region1: #{tpu_custom_call.1} parent=0
    #allocation2 [shape = 'u8[28672]{0}', space=vmem, size = 0x7000, scoped, tag = 'input window, operand 1, single buffered']
    #allocation3 [shape = 's32[1]{0}', space=sflag, size = 0x4, scoped, tag = 'scoped memory for tpu_custom_call.1']
    #allocation4 [shape = 's32[1]{0}', space=sflag, size = 0x4, scoped, tag = 'scoped memory for tpu_custom_call.1']
    #allocation5 [shape = 'u8[1024]{0}', space=vmem, size = 0x400, scoped, tag = 'output window, operand 0, single buffered']
    %12 = vsyncpa [#allocation3], 0
    %13 = vsyncpa [#allocation4], 0
    // Predicated region
    $region2: #{tpu_custom_call.1} parent=1 // pred_check
      _
    $region3: #{tpu_custom_call.1} parent=1 // pred_check_branch
      %15 = sbr.rel (0) target = $region5
    $region4: #{tpu_custom_call.1} parent=1 // pred_region
      _
    $region5: #{tpu_custom_call.1} parent=1 // pred_fallthru
      _
    // Predicated region
    $region6: #{tpu_custom_call.1} parent=1 // pred_check
      _
    $region7: #{tpu_custom_call.1} parent=1 // pred_check_branch
      %17 = sbr.rel (0) target = $region9
    $region8: #{tpu_custom_call.1} parent=1 // pred_region
      %19 = vsyncadd [#allocation3], 0
      %s20 = sshll.u32 %s1, 4
      %s21 = int_to_ptr.hbm [resolvable:$true] %s20
      %s22 = sshll.u32 [#allocation2], 4
      %s23 = int_to_ptr.vmem [resolvable:$true] %s22
      %28 = dma.hbm_to_vmem [thread:$0]  %s21, 896, %s23, [#allocation3], 128, 128, 8
    $region9: #{tpu_custom_call.1} parent=1 // pred_fallthru
      _
    // Predicated region
    $region10: #{tpu_custom_call.1} parent=1 // pred_check
      _
    $region11: #{tpu_custom_call.1} parent=1 // pred_check_branch
      %30 = sbr.rel (0) target = $region13
    $region12: #{tpu_custom_call.1} parent=1 // pred_region
      _
    $region13: #{tpu_custom_call.1} parent=1 // pred_fallthru
      _
    // Predicated region
    $region14: #{tpu_custom_call.1} parent=1 // pred_check
      _
    $region15: #{tpu_custom_call.1} parent=1 // pred_check_branch
      %32 = sbr.rel (0) target = $region17
    $region16: #{tpu_custom_call.1} parent=1 // pred_region
      _
    $region17: #{tpu_custom_call.1} parent=1 // pred_fallthru
      _
    // Predicated region
    $region18: #{tpu_custom_call.1} parent=1 // pred_check
      _
    $region19: #{tpu_custom_call.1} parent=1 // pred_check_branch
      %34 = sbr.rel (0) target = $region21
    $region20: #{tpu_custom_call.1} parent=1 // pred_region
      _
    $region21: #{tpu_custom_call.1} parent=1 // pred_fallthru
      _
    // Predicated region
    $region22: #{tpu_custom_call.1} parent=1 // pred_check
      _
    $region23: #{tpu_custom_call.1} parent=1 // pred_check_branch
      %36 = sbr.rel (0) target = $region25
    $region24: #{tpu_custom_call.1} parent=1 // pred_region
      _
    $region25: #{tpu_custom_call.1} parent=1 // pred_fallthru
      _
    // Predicated region
    $region26: #{tpu_custom_call.1} parent=1 // pred_check
      _
    $region27: #{tpu_custom_call.1} parent=1 // pred_check_branch
      %38 = sbr.rel (0) target = $region29
    $region28: #{tpu_custom_call.1} parent=1 // pred_region
      _
    $region29: #{tpu_custom_call.1} parent=1 // pred_fallthru
      _
    // Predicated region
    $region30: #{tpu_custom_call.1} parent=1 // pred_check
      _
    $region31: #{tpu_custom_call.1} parent=1 // pred_check_branch
      %40 = sbr.rel (0) target = $region33
    $region32: #{tpu_custom_call.1} parent=1 // pred_region
      %42 = dma.done [#allocation3], 896
    $region33: #{tpu_custom_call.1} parent=1 // pred_fallthru
      _
    %v43 = vld [vmem:[%s0] sm:$0x3]
    %v44 = vld [vmem:[#allocation2] sm:$0xff]
    %v45 = vld [vmem:[#allocation2 + $0x8] sm:$0xff]
    %v46 = vld [vmem:[#allocation2 + $0x10] sm:$0xff]
    %v47 = vld [vmem:[#allocation2 + $0x18] sm:$0xff]
    %v48 = vld [vmem:[#allocation2 + $0x20] sm:$0xff]
    %v49 = vld [vmem:[#allocation2 + $0x28] sm:$0xff]
    %v50 = vld [vmem:[#allocation2 + $0x30] sm:$0x3]
    %v51 = vld [vmem:[%s2] sm:$0x1]
    %v53 = vperm.slane %v51, 0
    %vm55 = vcmask 408576
    %v57 = vsel %vm55, %v43, 0
    %vm59 = vcmask 1041408
    %v61 = vsel %vm59, %v50, 0
    %63 = vmatpush.msra.mxu0 0.0
    %64 = vmatpush.msra.mxu0 0.0
    %65 = vmatpush.msra.mxu0 0.0
    %66 = vmatpush.msra.mxu0 0.0
    %67 = vmatpush.msra.mxu0 0.0
    %68 = vmatpush.msra.mxu0 0.0
    %69 = vmatpush.msra.mxu0 0.0
    %70 = vmatpush.msra.mxu0 0.0
    %71 = vmatpush.msra.mxu0 0.0
    %72 = vmatpush.msra.mxu0 %v61
    %73 = vmatpush.msra.mxu0 %v49
    %74 = vmatpush.msra.mxu0 %v48
    %75 = vmatpush.msra.mxu0 %v47
    %76 = vmatpush.msra.mxu0 %v46
    %77 = vmatpush.msra.mxu0 %v45
    %78 = vmatpush.msra.mxu0 %v44
    %79 = vmatmul.f32.gmra.mxu0 %v57
    %v80 = vpop.f32.mrf.mxu0
    %v81 = vadd.f32 %v53, %v80
    %82 = vdwg.mxu0
    %v83 = vmax.f32 %v81, 0.0
    %v84 = vld [vmem:[%s3] sm:$0xff]
    %v85 = vld [vmem:[%s3 + $0x8] sm:$0xff]
    %v86 = vld [vmem:[%s3 + $0x10] sm:$0xff]
    %v87 = vld [vmem:[%s3 + $0x18] sm:$0xff]
    %v88 = vld [vmem:[%s3 + $0x20] sm:$0xff]
    %v89 = vld [vmem:[%s3 + $0x28] sm:$0xff]
    %v90 = vld [vmem:[%s3 + $0x30] sm:$0xff]
    %v91 = vld [vmem:[%s3 + $0x38] sm:$0xff]
    %v92 = vld [vmem:[%s3 + $0x40] sm:$0xff]
    %v93 = vld [vmem:[%s3 + $0x48] sm:$0xff]
    %v94 = vld [vmem:[%s3 + $0x50] sm:$0xff]
    %v95 = vld [vmem:[%s3 + $0x58] sm:$0xff]
    %v96 = vld [vmem:[%s3 + $0x60] sm:$0xff]
    %v97 = vld [vmem:[%s3 + $0x68] sm:$0xff]
    %v98 = vld [vmem:[%s3 + $0x70] sm:$0xff]
    %v99 = vld [vmem:[%s3 + $0x78] sm:$0xff]
    %v100 = vld [vmem:[%s4] sm:$0x1]
    %v102 = vperm.slane %v100, 0
    %104 = vmatpush.msra.mxu0 %v99
    %105 = vmatpush.msra.mxu0 %v98
    %106 = vmatpush.msra.mxu0 %v97
    %107 = vmatpush.msra.mxu0 %v96
    %108 = vmatpush.msra.mxu0 %v95
    %109 = vmatpush.msra.mxu0 %v94
    %110 = vmatpush.msra.mxu0 %v93
    %111 = vmatpush.msra.mxu0 %v92
    %112 = vmatpush.msra.mxu0 %v91
    %113 = vmatpush.msra.mxu0 %v90
    %114 = vmatpush.msra.mxu0 %v89
    %115 = vmatpush.msra.mxu0 %v88
    %116 = vmatpush.msra.mxu0 %v87
    %117 = vmatpush.msra.mxu0 %v86
    %118 = vmatpush.msra.mxu0 %v85
    %119 = vmatpush.msra.mxu0 %v84
    %120 = vmatmul.f32.gmra.mxu0 %v83
    %v121 = vpop.f32.mrf.mxu0
    %v122 = vadd.f32 %v102, %v121
    %123 = vdwg.mxu0
    %v124 = vmax.f32 %v122, 0.0
    %v125 = vld [vmem:[%s5] sm:$0xff]
    %v126 = vld [vmem:[%s5 + $0x8] sm:$0xff]
    %v127 = vld [vmem:[%s5 + $0x10] sm:$0xff]
    %v128 = vld [vmem:[%s5 + $0x18] sm:$0xff]
    %v129 = vld [vmem:[%s5 + $0x20] sm:$0xff]
    %v130 = vld [vmem:[%s5 + $0x28] sm:$0xff]
    %v131 = vld [vmem:[%s5 + $0x30] sm:$0xff]
    %v132 = vld [vmem:[%s5 + $0x38] sm:$0xff]
    %v133 = vld [vmem:[%s5 + $0x40] sm:$0xff]
    %v134 = vld [vmem:[%s5 + $0x48] sm:$0xff]
    %v135 = vld [vmem:[%s5 + $0x50] sm:$0xff]
    %v136 = vld [vmem:[%s5 + $0x58] sm:$0xff]
    %v137 = vld [vmem:[%s5 + $0x60] sm:$0xff]
    %v138 = vld [vmem:[%s5 + $0x68] sm:$0xff]
    %v139 = vld [vmem:[%s5 + $0x70] sm:$0xff]
    %v140 = vld [vmem:[%s5 + $0x78] sm:$0xff]
    %v141 = vld [vmem:[%s6] sm:$0x1]
    %v143 = vperm.slane %v141, 0
    %145 = vmatpush.msra.mxu0 %v140
    %146 = vmatpush.msra.mxu0 %v139
    %147 = vmatpush.msra.mxu0 %v138
    %148 = vmatpush.msra.mxu0 %v137
    %149 = vmatpush.msra.mxu0 %v136
    %150 = vmatpush.msra.mxu0 %v135
    %151 = vmatpush.msra.mxu0 %v134
    %152 = vmatpush.msra.mxu0 %v133
    %153 = vmatpush.msra.mxu0 %v132
    %154 = vmatpush.msra.mxu0 %v131
    %155 = vmatpush.msra.mxu0 %v130
    %156 = vmatpush.msra.mxu0 %v129
    %157 = vmatpush.msra.mxu0 %v128
    %158 = vmatpush.msra.mxu0 %v127
    %159 = vmatpush.msra.mxu0 %v126
    %160 = vmatpush.msra.mxu0 %v125
    %161 = vmatmul.f32.gmra.mxu0 %v124
    %v162 = vpop.f32.mrf.mxu0
    %v163 = vadd.f32 %v143, %v162
    %164 = vdwg.mxu0
    %vm165 = vcmask 17408
    %166 = vst.msk [vmem:[#allocation5] sm:$0x3] %vm165, %v163
    // Predicated region
    $region34: #{tpu_custom_call.1} parent=1 // pred_check
      _
    $region35: #{tpu_custom_call.1} parent=1 // pred_check_branch
      %168 = sbr.rel (0) target = $region37
    $region36: #{tpu_custom_call.1} parent=1 // pred_region
      %170 = vsyncadd [#allocation4], 0
      %s172 = sshll.u32 [#allocation5], 4
      %s173 = int_to_ptr.vmem [resolvable:$true] %s172
      %s174 = sshll.u32 %s7, 4
      %s175 = int_to_ptr.hbm [resolvable:$true] %s174
      %177 = dma.vmem_to_hbm [thread:$0]  %s173, 32, %s175, [#allocation4]
    $region37: #{tpu_custom_call.1} parent=1 // pred_fallthru
      _
    // Predicated region
    $region38: #{tpu_custom_call.1} parent=1 // pred_check
      _
    $region39: #{tpu_custom_call.1} parent=1 // pred_check_branch
      %179 = sbr.rel (0) target = $region41
    $region40: #{tpu_custom_call.1} parent=1 // pred_region
      %181 = dma.done [#allocation4], 32
    $region41: #{tpu_custom_call.1} parent=1 // pred_fallthru
      _
    %182 = vsyncpa [#allocation3], 1
    %183 = vsyncpa [#allocation4], 1

</llo_original>
